<compile_context>
chip_gen: v5e
topology: v5e:2x2
jax: 0.10.0
libtpu: 0.0.40
codegen_flags: <defaults>
</compile_context>

<pallas_src>
import jax
import jax.numpy as jnp
from jax.experimental import pallas as pl
from jax.experimental.pallas import tpu as pltpu


def _round_up(n, m):
    return ((n + m - 1) // m) * m


def _pad2d(a, rows, cols):
    r, c = a.shape
    return jnp.pad(a, ((0, rows - r), (0, cols - c)))


def _critic_kernel(xu_ref,
                   w1_ref, b1_ref,
                   w2_ref, b2_ref,
                   w3_ref, b3_ref,
                   w4_ref, b4_ref,
                   w5_ref, b5_ref,
                   out_ref):
    """One batch tile of the full 5-layer MLP (weights VMEM-resident)."""

    def lin_relu(h, w_ref, b_ref):
        # bf16 matmul on the MXU, f32 accumulation; bias + ReLU in f32 on the
        # VPU; narrow back to bf16 so inter-layer activations stay half-size.
        y = jnp.dot(h, w_ref[...], preferred_element_type=jnp.float32)
        return jnp.maximum(y + b_ref[...], 0.0).astype(w_ref.dtype)

    h = lin_relu(xu_ref[...], w1_ref, b1_ref)   # layer 1 on fused [x, u] slab
    h = lin_relu(h, w2_ref, b2_ref)
    h = lin_relu(h, w3_ref, b3_ref)
    h = lin_relu(h, w4_ref, b4_ref)
    h = lin_relu(h, w5_ref, b5_ref)             # final ReLU: matches torch.
    out_ref[...] = h.astype(out_ref.dtype)


def prepare_critic_params(params, matmul_dtype=jnp.bfloat16):
    """One-time (param-update-time) padding + casting of the weights.

    params[i] = (W_i, b_i) with W_i stored (in_features, out_features); W_1's
    input axis is the concatenated [state, action] axis.  Returns the flat
    tuple (W1, b1, W2, b2, W3, b3, W4, b4, W5, b5) with every feature axis
    padded to a multiple of 128.  Weights are `matmul_dtype`, biases are
    (1, out_padded) float32.  Padded rows/cols are exactly zero (inert).
    """
    flat = []
    for w, b in params:
        ip = _round_up(w.shape[0], 128)
        op = _round_up(w.shape[1], 128)
        flat.append(_pad2d(w.astype(matmul_dtype), ip, op))
        flat.append(_pad2d(b.astype(jnp.float32).reshape(1, -1), 1, op))
    return tuple(jax.device_put(p) for p in flat)


@jax.jit
def critic_forward(x, u, prepared):
    """x: (B, state_dim), u: (B, action_dim) -> q: (B, 1) float32."""
    w1 = prepared[0]
    in_p = w1.shape[0]               # padded (state_dim + action_dim)
    out_p = prepared[-2].shape[1]    # padded final width (128)
    B = x.shape[0]

    # Fused bf16 input slab: cat([x, u], 1).  The cast fuses into the pad, so
    # the per-tile input stream is a single half-width (bf16) DMA.
    xu = jnp.concatenate([x.astype(w1.dtype), u.astype(w1.dtype)], axis=1)

    # Batch tile: <=512 rows, multiple of 16, and sized so there are >= 2 grid
    # steps (so the "parallel" axis actually uses both v7x TensorCores).
    TB = min(512, _round_up(max(pl.cdiv(B, 2), 1), 16))
    Bp = _round_up(B, TB)
    if Bp // TB < 2:
        Bp = 2 * TB
    grid = (Bp // TB,)

    xup = _pad2d(xu, Bp, in_p)       # zero pads are inert through the net.

    def const_spec(arr):
        # Constant block index -> fetched once, VMEM-resident across steps.
        # (pipeline_mode=pl.Buffered(1) would also drop the redundant second
        #  buffer, but the ~0.5 MiB saved is negligible here.)
        return pl.BlockSpec(arr.shape, lambda i: (0, 0))

    in_specs = ([pl.BlockSpec((TB, in_p), lambda i: (i, 0))]
                + [const_spec(p) for p in prepared])

    flops = sum(2 * Bp * w.shape[0] * w.shape[1] for w in prepared[0::2])
    bytes_accessed = (
        int(xup.size) * xup.dtype.itemsize
        + Bp * out_p * jnp.dtype(w1.dtype).itemsize
        + sum(int(p.size) * p.dtype.itemsize for p in prepared))
    cost = pl.CostEstimate(flops=int(flops), transcendentals=0,
                           bytes_accessed=int(bytes_accessed))

    out = pl.pallas_call(
        _critic_kernel,
        out_shape=jax.ShapeDtypeStruct((Bp, out_p), w1.dtype),  # bf16 slab
        grid=grid,
        in_specs=in_specs,
        out_specs=pl.BlockSpec((TB, out_p), lambda i: (i, 0)),
        compiler_params=pltpu.CompilerParams(
            dimension_semantics=("parallel",)),
        cost_estimate=cost,
    )(xup, *prepared)

    return out[:B, :1].astype(jnp.float32)


def init_critic_params(key, state_dim, action_dim):
    """Deterministic synthetic parameters (same shapes as the torch module)."""
    dims = [state_dim + action_dim, 300, 200, 100, 50, 1]
    params = []
    for i in range(5):
        key, kw, kb = jax.random.split(key, 3)
        bound = 1.0 / jnp.sqrt(dims[i])
        # stored as (in_features, out_features) so forward is h @ W + b
        w = jax.random.uniform(kw, (dims[i], dims[i + 1]),
                               minval=-bound, maxval=bound, dtype=jnp.float32)
        b = jax.random.uniform(kb, (dims[i + 1],),
                               minval=-bound, maxval=bound, dtype=jnp.float32)
        params.append((w, b))
    return params


if __name__ == "__main__":
    state_dim, action_dim, batch = 16, 4, 2

    key = jax.random.PRNGKey(0)
    kx, ku, kp = jax.random.split(key, 3)

    x = jax.random.normal(kx, (batch, state_dim), dtype=jnp.float32)
    u = jax.random.normal(ku, (batch, action_dim), dtype=jnp.float32)
    params = init_critic_params(kp, state_dim, action_dim)

    # Padding / casting happens once here, not in the per-call hot path.
    prepared = prepare_critic_params(params)

    q = critic_forward(x, u, prepared)
    jax.block_until_ready(q)

    # Pure-JAX f32 reference for a sanity check.
    def ref_forward(x, u, params):
        h = jnp.concatenate([x, u], axis=1)
        for w, b in params:
            h = jnp.maximum(h @ w + b, 0.0)
        return h

    q_ref = ref_forward(x, u, params)
    assert q.shape == (batch, 1)
    # bf16 weights + bf16 inter-layer activations (f32 accumulation) vs a
    # pure-f32 reference: loosened tolerance.
    assert jnp.allclose(q, q_ref, atol=5e-2, rtol=5e-2), (q, q_ref)

    print("KERNEL_OK")
</pallas_src>

<mosaic_0001>
module attributes {stable_mosaic.version = 11 : i64} {
  func.func @_critic_kernel(%arg0: i32, %arg1: memref<16x128xbf16, #tpu.memory_space<vmem>>, %arg2: memref<128x384xbf16, #tpu.memory_space<vmem>>, %arg3: memref<1x384xf32, #tpu.memory_space<vmem>>, %arg4: memref<384x256xbf16, #tpu.memory_space<vmem>>, %arg5: memref<1x256xf32, #tpu.memory_space<vmem>>, %arg6: memref<256x128xbf16, #tpu.memory_space<vmem>>, %arg7: memref<1x128xf32, #tpu.memory_space<vmem>>, %arg8: memref<128x128xbf16, #tpu.memory_space<vmem>>, %arg9: memref<1x128xf32, #tpu.memory_space<vmem>>, %arg10: memref<128x128xbf16, #tpu.memory_space<vmem>>, %arg11: memref<1x128xf32, #tpu.memory_space<vmem>>, %arg12: memref<16x128xbf16, #tpu.memory_space<vmem>>) attributes {dimension_semantics = [#tpu.dimension_semantics<parallel>], iteration_bounds = array<i64: 2>, scalar_prefetch = 0 : i64, scratch_operands = 0 : i64, tpu.core_type = #tpu.core_type<tc>, window_params = [{transform_indices = @transform_0, window_bounds = array<i64: 16, 128>}, {pipeline_mode = #tpu.pipeline_mode<synchronous>, transform_indices = @transform_1, window_bounds = array<i64: 128, 384>}, {pipeline_mode = #tpu.pipeline_mode<synchronous>, transform_indices = @transform_2, window_bounds = array<i64: 1, 384>}, {pipeline_mode = #tpu.pipeline_mode<synchronous>, transform_indices = @transform_3, window_bounds = array<i64: 384, 256>}, {pipeline_mode = #tpu.pipeline_mode<synchronous>, transform_indices = @transform_4, window_bounds = array<i64: 1, 256>}, {pipeline_mode = #tpu.pipeline_mode<synchronous>, transform_indices = @transform_5, window_bounds = array<i64: 256, 128>}, {pipeline_mode = #tpu.pipeline_mode<synchronous>, transform_indices = @transform_6, window_bounds = array<i64: 1, 128>}, {pipeline_mode = #tpu.pipeline_mode<synchronous>, transform_indices = @transform_7, window_bounds = array<i64: 128, 128>}, {pipeline_mode = #tpu.pipeline_mode<synchronous>, transform_indices = @transform_8, window_bounds = array<i64: 1, 128>}, {pipeline_mode = #tpu.pipeline_mode<synchronous>, transform_indices = @transform_9, window_bounds = array<i64: 128, 128>}, {pipeline_mode = #tpu.pipeline_mode<synchronous>, transform_indices = @transform_10, window_bounds = array<i64: 1, 128>}, {transform_indices = @transform_11, window_bounds = array<i64: 16, 128>}]} {
    %c0 = arith.constant 0 : index
    %c0_0 = arith.constant 0 : index
    %0 = vector.load %arg1[%c0, %c0_0] : memref<16x128xbf16, #tpu.memory_space<vmem>>, vector<16x128xbf16>
    %c0_1 = arith.constant 0 : index
    %c0_2 = arith.constant 0 : index
    %1 = vector.load %arg2[%c0_1, %c0_2] : memref<128x384xbf16, #tpu.memory_space<vmem>>, vector<128x384xbf16>
    %cst = arith.constant dense<0.000000e+00> : vector<16x384xf32>
    %2 = tpu.matmul %0, %1, %cst {dimension_numbers = #tpu.dot_dimension_numbers<[1], [0], [0], [1], [0, 0, 1, 1], [], []>} : vector<16x128xbf16>, vector<128x384xbf16>, vector<16x384xf32> -> vector<16x384xf32>
    %c0_3 = arith.constant 0 : index
    %c0_4 = arith.constant 0 : index
    %3 = vector.load %arg3[%c0_3, %c0_4] : memref<1x384xf32, #tpu.memory_space<vmem>>, vector<1x384xf32>
    %4 = vector.broadcast %3 : vector<1x384xf32> to vector<16x384xf32>
    %5 = arith.addf %2, %4 : vector<16x384xf32>
    %cst_5 = arith.constant 0.000000e+00 : f32
    %6 = vector.broadcast %cst_5 : f32 to vector<16x384xf32>
    %7 = arith.maximumf %5, %6 : vector<16x384xf32>
    %8 = arith.truncf %7 : vector<16x384xf32> to vector<16x384xbf16>
    %c0_6 = arith.constant 0 : index
    %c0_7 = arith.constant 0 : index
    %9 = vector.load %arg4[%c0_6, %c0_7] : memref<384x256xbf16, #tpu.memory_space<vmem>>, vector<384x256xbf16>
    %cst_8 = arith.constant dense<0.000000e+00> : vector<16x256xf32>
    %10 = tpu.matmul %8, %9, %cst_8 {dimension_numbers = #tpu.dot_dimension_numbers<[1], [0], [0], [1], [0, 0, 1, 1], [], []>} : vector<16x384xbf16>, vector<384x256xbf16>, vector<16x256xf32> -> vector<16x256xf32>
    %c0_9 = arith.constant 0 : index
    %c0_10 = arith.constant 0 : index
    %11 = vector.load %arg5[%c0_9, %c0_10] : memref<1x256xf32, #tpu.memory_space<vmem>>, vector<1x256xf32>
    %12 = vector.broadcast %11 : vector<1x256xf32> to vector<16x256xf32>
    %13 = arith.addf %10, %12 : vector<16x256xf32>
    %cst_11 = arith.constant 0.000000e+00 : f32
    %14 = vector.broadcast %cst_11 : f32 to vector<16x256xf32>
    %15 = arith.maximumf %13, %14 : vector<16x256xf32>
    %16 = arith.truncf %15 : vector<16x256xf32> to vector<16x256xbf16>
    %c0_12 = arith.constant 0 : index
    %c0_13 = arith.constant 0 : index
    %17 = vector.load %arg6[%c0_12, %c0_13] : memref<256x128xbf16, #tpu.memory_space<vmem>>, vector<256x128xbf16>
    %cst_14 = arith.constant dense<0.000000e+00> : vector<16x128xf32>
    %18 = tpu.matmul %16, %17, %cst_14 {dimension_numbers = #tpu.dot_dimension_numbers<[1], [0], [0], [1], [0, 0, 1, 1], [], []>} : vector<16x256xbf16>, vector<256x128xbf16>, vector<16x128xf32> -> vector<16x128xf32>
    %c0_15 = arith.constant 0 : index
    %c0_16 = arith.constant 0 : index
    %19 = vector.load %arg7[%c0_15, %c0_16] : memref<1x128xf32, #tpu.memory_space<vmem>>, vector<1x128xf32>
    %20 = vector.broadcast %19 : vector<1x128xf32> to vector<16x128xf32>
    %21 = arith.addf %18, %20 : vector<16x128xf32>
    %cst_17 = arith.constant 0.000000e+00 : f32
    %22 = vector.broadcast %cst_17 : f32 to vector<16x128xf32>
    %23 = arith.maximumf %21, %22 : vector<16x128xf32>
    %24 = arith.truncf %23 : vector<16x128xf32> to vector<16x128xbf16>
    %c0_18 = arith.constant 0 : index
    %c0_19 = arith.constant 0 : index
    %25 = vector.load %arg8[%c0_18, %c0_19] : memref<128x128xbf16, #tpu.memory_space<vmem>>, vector<128x128xbf16>
    %cst_20 = arith.constant dense<0.000000e+00> : vector<16x128xf32>
    %26 = tpu.matmul %24, %25, %cst_20 {dimension_numbers = #tpu.dot_dimension_numbers<[1], [0], [0], [1], [0, 0, 1, 1], [], []>} : vector<16x128xbf16>, vector<128x128xbf16>, vector<16x128xf32> -> vector<16x128xf32>
    %c0_21 = arith.constant 0 : index
    %c0_22 = arith.constant 0 : index
    %27 = vector.load %arg9[%c0_21, %c0_22] : memref<1x128xf32, #tpu.memory_space<vmem>>, vector<1x128xf32>
    %28 = vector.broadcast %27 : vector<1x128xf32> to vector<16x128xf32>
    %29 = arith.addf %26, %28 : vector<16x128xf32>
    %cst_23 = arith.constant 0.000000e+00 : f32
    %30 = vector.broadcast %cst_23 : f32 to vector<16x128xf32>
    %31 = arith.maximumf %29, %30 : vector<16x128xf32>
    %32 = arith.truncf %31 : vector<16x128xf32> to vector<16x128xbf16>
    %c0_24 = arith.constant 0 : index
    %c0_25 = arith.constant 0 : index
    %33 = vector.load %arg10[%c0_24, %c0_25] : memref<128x128xbf16, #tpu.memory_space<vmem>>, vector<128x128xbf16>
    %cst_26 = arith.constant dense<0.000000e+00> : vector<16x128xf32>
    %34 = tpu.matmul %32, %33, %cst_26 {dimension_numbers = #tpu.dot_dimension_numbers<[1], [0], [0], [1], [0, 0, 1, 1], [], []>} : vector<16x128xbf16>, vector<128x128xbf16>, vector<16x128xf32> -> vector<16x128xf32>
    %c0_27 = arith.constant 0 : index
    %c0_28 = arith.constant 0 : index
    %35 = vector.load %arg11[%c0_27, %c0_28] : memref<1x128xf32, #tpu.memory_space<vmem>>, vector<1x128xf32>
    %36 = vector.broadcast %35 : vector<1x128xf32> to vector<16x128xf32>
    %37 = arith.addf %34, %36 : vector<16x128xf32>
    %cst_29 = arith.constant 0.000000e+00 : f32
    %38 = vector.broadcast %cst_29 : f32 to vector<16x128xf32>
    %39 = arith.maximumf %37, %38 : vector<16x128xf32>
    %40 = arith.truncf %39 : vector<16x128xf32> to vector<16x128xbf16>
    %c0_30 = arith.constant 0 : index
    %c0_31 = arith.constant 0 : index
    %41 = vector.load %arg12[%c0_30, %c0_31] : memref<16x128xbf16, #tpu.memory_space<vmem>>, vector<16x128xbf16>
    tpu.vector_store %arg12[%c0_30, %c0_31], %40 {strides = array<i32>} : memref<16x128xbf16, #tpu.memory_space<vmem>>, vector<16x128xbf16>,
    return
  }
  func.func @transform_0(%arg0: i32) -> (i32, i32) {
    %c0_i32 = arith.constant 0 : i32
    %c0_i32_0 = arith.constant 0 : i32
    return %arg0, %c0_i32 : i32, i32
  }
  func.func @transform_1(%arg0: i32) -> (i32, i32) {
    %c0_i32 = arith.constant 0 : i32
    %c0_i32_0 = arith.constant 0 : i32
    %c0_i32_1 = arith.constant 0 : i32
    return %c0_i32, %c0_i32_0 : i32, i32
  }
  func.func @transform_2(%arg0: i32) -> (i32, i32) {
    %c0_i32 = arith.constant 0 : i32
    %c0_i32_0 = arith.constant 0 : i32
    %c0_i32_1 = arith.constant 0 : i32
    return %c0_i32, %c0_i32_0 : i32, i32
  }
  func.func @transform_3(%arg0: i32) -> (i32, i32) {
    %c0_i32 = arith.constant 0 : i32
    %c0_i32_0 = arith.constant 0 : i32
    %c0_i32_1 = arith.constant 0 : i32
    return %c0_i32, %c0_i32_0 : i32, i32
  }
  func.func @transform_4(%arg0: i32) -> (i32, i32) {
    %c0_i32 = arith.constant 0 : i32
    %c0_i32_0 = arith.constant 0 : i32
    %c0_i32_1 = arith.constant 0 : i32
    return %c0_i32, %c0_i32_0 : i32, i32
  }
  func.func @transform_5(%arg0: i32) -> (i32, i32) {
    %c0_i32 = arith.constant 0 : i32
    %c0_i32_0 = arith.constant 0 : i32
    %c0_i32_1 = arith.constant 0 : i32
    return %c0_i32, %c0_i32_0 : i32, i32
  }
  func.func @transform_6(%arg0: i32) -> (i32, i32) {
    %c0_i32 = arith.constant 0 : i32
    %c0_i32_0 = arith.constant 0 : i32
    %c0_i32_1 = arith.constant 0 : i32
    return %c0_i32, %c0_i32_0 : i32, i32
  }
  func.func @transform_7(%arg0: i32) -> (i32, i32) {
    %c0_i32 = arith.constant 0 : i32
    %c0_i32_0 = arith.constant 0 : i32
    %c0_i32_1 = arith.constant 0 : i32
    return %c0_i32, %c0_i32_0 : i32, i32
  }
  func.func @transform_8(%arg0: i32) -> (i32, i32) {
    %c0_i32 = arith.constant 0 : i32
    %c0_i32_0 = arith.constant 0 : i32
    %c0_i32_1 = arith.constant 0 : i32
    return %c0_i32, %c0_i32_0 : i32, i32
  }
  func.func @transform_9(%arg0: i32) -> (i32, i32) {
    %c0_i32 = arith.constant 0 : i32
    %c0_i32_0 = arith.constant 0 : i32
    %c0_i32_1 = arith.constant 0 : i32
    return %c0_i32, %c0_i32_0 : i32, i32
  }
  func.func @transform_10(%arg0: i32) -> (i32, i32) {
    %c0_i32 = arith.constant 0 : i32
    %c0_i32_0 = arith.constant 0 : i32
    %c0_i32_1 = arith.constant 0 : i32
    return %c0_i32, %c0_i32_0 : i32, i32
  }
  func.func @transform_11(%arg0: i32) -> (i32, i32) {
    %c0_i32 = arith.constant 0 : i32
    %c0_i32_0 = arith.constant 0 : i32
    return %arg0, %c0_i32 : i32, i32
  }
}

</mosaic_0001>

<llo_original>
// kernel: critic_forward.1
$region0: #{critic_forward.1}
  #allocation0 [shape = 'u32[]', space=smem, size = 0x4, offset = 0x4, fixed_abs, tag = 'smem constant byte address 0x4 - core index']
  #allocation1 [shape = 'u32[72,128]{1,0:T(1,128)}', space=vmem, size = 0x9000, scoped, tag = 'internal scratch']
  %s0 = inlined_call_operand.vmem [shape: bf16[32,128], index: 0, kind: input, shape index: {}]
  %s1 = inlined_call_operand.hbm [shape: bf16[128,384], index: 1, kind: input, shape index: {}]
  %s2 = inlined_call_operand.vmem [shape: f32[1,384], index: 2, kind: input, shape index: {}]
  %s3 = inlined_call_operand.hbm [shape: bf16[384,256], index: 3, kind: input, shape index: {}]
  %s4 = inlined_call_operand.vmem [shape: f32[1,256], index: 4, kind: input, shape index: {}]
  %s5 = inlined_call_operand.hbm [shape: bf16[256,128], index: 5, kind: input, shape index: {}]
  %s6 = inlined_call_operand.vmem [shape: f32[1,128], index: 6, kind: input, shape index: {}]
  %s7 = inlined_call_operand.hbm [shape: bf16[128,128], index: 7, kind: input, shape index: {}]
  %s8 = inlined_call_operand.vmem [shape: f32[1,128], index: 8, kind: input, shape index: {}]
  %s9 = inlined_call_operand.hbm [shape: bf16[128,128], index: 9, kind: input, shape index: {}]
  %s10 = inlined_call_operand.vmem [shape: f32[1,128], index: 10, kind: input, shape index: {}]
  %s11 = inlined_call_operand.vmem [shape: bf16[32,128], index: 11, kind: output, shape index: {}]
  %s12 = sld [smem:[#allocation0]]
  $region97: #{critic_forward.1} parent=0
    _
  %s14 = ssub.s32 1, %s12
  %s15 = scalar_select 0, %s14, %s12
  $region1: #{critic_forward.1} parent=0
    #allocation2 [shape = 'u8[98304]{0}', space=vmem, size = 0x18000, scoped, tag = 'input window, operand 1, single buffered']
    #allocation3 [shape = 's32[2]{0}', space=sflag, size = 0x8, scoped, tag = 'scoped memory for critic_forward.1']
    #allocation4 [shape = 'u8[196608]{0}', space=vmem, size = 0x30000, scoped, tag = 'input window, operand 3, single buffered']
    #allocation5 [shape = 's32[1]{0}', space=sflag, size = 0x4, scoped, tag = 'scoped memory for critic_forward.1']
    #allocation6 [shape = 'u8[65536]{0}', space=vmem, size = 0x10000, scoped, tag = 'input window, operand 5, single buffered']
    #allocation7 [shape = 'u8[32768]{0}', space=vmem, size = 0x8000, scoped, tag = 'input window, operand 7, single buffered']
    #allocation8 [shape = 's32[1]{0}', space=sflag, size = 0x4, scoped, tag = 'scoped memory for critic_forward.1']
    #allocation9 [shape = 'u8[32768]{0}', space=vmem, size = 0x8000, scoped, tag = 'input window, operand 9, single buffered']
    %16 = vsyncpa [#allocation3], 0
    %17 = vsyncpa [#allocation5], 0
    %18 = vsyncpa [#allocation8], 0
    loop: start=0, step=1, limit=4
    $region2: #{critic_forward.1} parent=1 // loop_pre_header
      _
    $region3: #{critic_forward.1} parent=1 // loop_header
      %s20 = sphi 0, %s24
      %p21 = scmp.ge.s32.totalorder %s20, 4
      %s30 = sphi 0, %s32
      %s33 = sphi 0, %s30
      %s34 = sphi 0, %s33
      %s50 = sphi 0, %s34
      %s54 = sphi 0, %s54
      %s56 = sphi 0, %s54
      %s57 = sphi 0, %s56
      %s71 = sphi 0, %s57
      %s75 = sphi 0, %s75
      %s77 = sphi 0, %s75
      %s78 = sphi 0, %s77
      %s92 = sphi 0, %s78
      %s96 = sphi 0, %s96
      %s98 = sphi 0, %s96
      %s99 = sphi 0, %s98
      %s113 = sphi 0, %s99
      %s117 = sphi 0, %s117
      %s119 = sphi 0, %s117
      %s120 = sphi 0, %s119
      %s134 = sphi 0, %s120
      %s138 = sphi 0, %s138
      %s140 = sphi 0, %s138
      %s141 = sphi 0, %s140
      %s155 = sphi 0, %s141
      %s159 = sphi 0, %s159
      %s161 = sphi 0, %s159
      %s162 = sphi 0, %s161
      %s176 = sphi 0, %s162
      %s180 = sphi 0, %s180
      %s182 = sphi 0, %s180
      %s183 = sphi 0, %s182
      %s197 = sphi 0, %s183
      %s201 = sphi 0, %s201
      %s203 = sphi 0, %s201
      %s204 = sphi 0, %s203
      %s218 = sphi 0, %s204
      %s222 = sphi 0, %s222
      %s224 = sphi 0, %s222
      %s225 = sphi 0, %s224
      %s239 = sphi 0, %s225
      %s243 = sphi 0, %s243
      %s245 = sphi 0, %s243
      %s246 = sphi 0, %s245
      %s260 = sphi 0, %s246
      %s266 = sphi 0, %s268
      %s269 = sphi 0, %s266
      %s270 = sphi 0, %s269
      %s286 = sphi 0, %s270
    $region4: #{critic_forward.1} parent=1 // loop_header_branch
      %23 = sbr.rel (%p21) target = $region8
    $region5: #{critic_forward.1} parent=1 // loop_body
      %s25 = ssub.s32 %s20, 1
      %s26 = ssub.s32 %s20, 2
      %s27 = sadd.s32 %s20, 1
      %s28 = ssub.s32 %s20, %s27
      %p29 = scmp.eq.s32.totalorder %s28, 0
      %s31 = sadd.s32 %s30, 1
      %s32 = scalar_select %p29, %s30, %s31
      %p35 = pneg %p29
      %p36 = scmp.eq.s32.totalorder %s20, 1
      %p37 = por %p35, %p36
      %p38 = scmp.ne.s32.totalorder %s30, %s33
      %p39 = scmp.eq.s32.totalorder %s20, 0
      %p40 = por %p38, %p39
      %p41 = scmp.ne.s32.totalorder %s30, %s33
      %p42 = scmp.eq.s32.totalorder %s25, 1
      %p43 = por %p41, %p42
      %p44 = scmp.ne.s32.totalorder %s33, %s34
      %p45 = scmp.eq.s32.totalorder %s25, 0
      %p46 = por %p44, %p45
      %p47 = scmp.ne.s32.totalorder %s33, %s34
      %p48 = scmp.eq.s32.totalorder %s26, 1
      %p49 = por %p47, %p48
      %p51 = scmp.ne.s32.totalorder %s34, %s50
      %p52 = scmp.eq.s32.totalorder %s26, 0
      %p53 = por %p51, %p52
      %s55 = sadd.s32 %s54, 1
      %p58 = scmp.eq.s32.totalorder %s20, 1
      %p59 = scmp.ne.s32.totalorder %s54, %s56
      %p60 = scmp.eq.s32.totalorder %s20, 0
      %p61 = por %p59, %p60
      %p62 = scmp.ne.s32.totalorder %s54, %s56
      %p63 = scmp.eq.s32.totalorder %s25, 1
      %p64 = por %p62, %p63
      %p65 = scmp.ne.s32.totalorder %s56, %s57
      %p66 = scmp.eq.s32.totalorder %s25, 0
      %p67 = por %p65, %p66
      %p68 = scmp.ne.s32.totalorder %s56, %s57
      %p69 = scmp.eq.s32.totalorder %s26, 1
      %p70 = por %p68, %p69
      %p72 = scmp.ne.s32.totalorder %s57, %s71
      %p73 = scmp.eq.s32.totalorder %s26, 0
      %p74 = por %p72, %p73
      %s76 = sadd.s32 %s75, 1
      %p79 = scmp.eq.s32.totalorder %s20, 1
      %p80 = scmp.ne.s32.totalorder %s75, %s77
      %p81 = scmp.eq.s32.totalorder %s20, 0
      %p82 = por %p80, %p81
      %p83 = scmp.ne.s32.totalorder %s75, %s77
      %p84 = scmp.eq.s32.totalorder %s25, 1
      %p85 = por %p83, %p84
      %p86 = scmp.ne.s32.totalorder %s77, %s78
      %p87 = scmp.eq.s32.totalorder %s25, 0
      %p88 = por %p86, %p87
      %p89 = scmp.ne.s32.totalorder %s77, %s78
      %p90 = scmp.eq.s32.totalorder %s26, 1
      %p91 = por %p89, %p90
      %p93 = scmp.ne.s32.totalorder %s78, %s92
      %p94 = scmp.eq.s32.totalorder %s26, 0
      %p95 = por %p93, %p94
      %s97 = sadd.s32 %s96, 1
      %p100 = scmp.eq.s32.totalorder %s20, 1
      %p101 = scmp.ne.s32.totalorder %s96, %s98
      %p102 = scmp.eq.s32.totalorder %s20, 0
      %p103 = por %p101, %p102
      %p104 = scmp.ne.s32.totalorder %s96, %s98
      %p105 = scmp.eq.s32.totalorder %s25, 1
      %p106 = por %p104, %p105
      %p107 = scmp.ne.s32.totalorder %s98, %s99
      %p108 = scmp.eq.s32.totalorder %s25, 0
      %p109 = por %p107, %p108
      %p110 = scmp.ne.s32.totalorder %s98, %s99
      %p111 = scmp.eq.s32.totalorder %s26, 1
      %p112 = por %p110, %p111
      %p114 = scmp.ne.s32.totalorder %s99, %s113
      %p115 = scmp.eq.s32.totalorder %s26, 0
      %p116 = por %p114, %p115
      %s118 = sadd.s32 %s117, 1
      %p121 = scmp.eq.s32.totalorder %s20, 1
      %p122 = scmp.ne.s32.totalorder %s117, %s119
      %p123 = scmp.eq.s32.totalorder %s20, 0
      %p124 = por %p122, %p123
      %p125 = scmp.ne.s32.totalorder %s117, %s119
      %p126 = scmp.eq.s32.totalorder %s25, 1
      %p127 = por %p125, %p126
      %p128 = scmp.ne.s32.totalorder %s119, %s120
      %p129 = scmp.eq.s32.totalorder %s25, 0
      %p130 = por %p128, %p129
      %p131 = scmp.ne.s32.totalorder %s119, %s120
      %p132 = scmp.eq.s32.totalorder %s26, 1
      %p133 = por %p131, %p132
      %p135 = scmp.ne.s32.totalorder %s120, %s134
      %p136 = scmp.eq.s32.totalorder %s26, 0
      %p137 = por %p135, %p136
      %s139 = sadd.s32 %s138, 1
      %p142 = scmp.eq.s32.totalorder %s20, 1
      %p143 = scmp.ne.s32.totalorder %s138, %s140
      %p144 = scmp.eq.s32.totalorder %s20, 0
      %p145 = por %p143, %p144
      %p146 = scmp.ne.s32.totalorder %s138, %s140
      %p147 = scmp.eq.s32.totalorder %s25, 1
      %p148 = por %p146, %p147
      %p149 = scmp.ne.s32.totalorder %s140, %s141
      %p150 = scmp.eq.s32.totalorder %s25, 0
      %p151 = por %p149, %p150
      %p152 = scmp.ne.s32.totalorder %s140, %s141
      %p153 = scmp.eq.s32.totalorder %s26, 1
      %p154 = por %p152, %p153
      %p156 = scmp.ne.s32.totalorder %s141, %s155
      %p157 = scmp.eq.s32.totalorder %s26, 0
      %p158 = por %p156, %p157
      %s160 = sadd.s32 %s159, 1
      %p163 = scmp.eq.s32.totalorder %s20, 1
      %p164 = scmp.ne.s32.totalorder %s159, %s161
      %p165 = scmp.eq.s32.totalorder %s20, 0
      %p166 = por %p164, %p165
      %p167 = scmp.ne.s32.totalorder %s159, %s161
      %p168 = scmp.eq.s32.totalorder %s25, 1
      %p169 = por %p167, %p168
      %p170 = scmp.ne.s32.totalorder %s161, %s162
      %p171 = scmp.eq.s32.totalorder %s25, 0
      %p172 = por %p170, %p171
      %p173 = scmp.ne.s32.totalorder %s161, %s162
      %p174 = scmp.eq.s32.totalorder %s26, 1
      %p175 = por %p173, %p174
      %p177 = scmp.ne.s32.totalorder %s162, %s176
      %p178 = scmp.eq.s32.totalorder %s26, 0
      %p179 = por %p177, %p178
      %s181 = sadd.s32 %s180, 1
      %p184 = scmp.eq.s32.totalorder %s20, 1
      %p185 = scmp.ne.s32.totalorder %s180, %s182
      %p186 = scmp.eq.s32.totalorder %s20, 0
      %p187 = por %p185, %p186
      %p188 = scmp.ne.s32.totalorder %s180, %s182
      %p189 = scmp.eq.s32.totalorder %s25, 1
      %p190 = por %p188, %p189
      %p191 = scmp.ne.s32.totalorder %s182, %s183
      %p192 = scmp.eq.s32.totalorder %s25, 0
      %p193 = por %p191, %p192
      %p194 = scmp.ne.s32.totalorder %s182, %s183
      %p195 = scmp.eq.s32.totalorder %s26, 1
      %p196 = por %p194, %p195
      %p198 = scmp.ne.s32.totalorder %s183, %s197
      %p199 = scmp.eq.s32.totalorder %s26, 0
      %p200 = por %p198, %p199
      %s202 = sadd.s32 %s201, 1
      %p205 = scmp.eq.s32.totalorder %s20, 1
      %p206 = scmp.ne.s32.totalorder %s201, %s203
      %p207 = scmp.eq.s32.totalorder %s20, 0
      %p208 = por %p206, %p207
      %p209 = scmp.ne.s32.totalorder %s201, %s203
      %p210 = scmp.eq.s32.totalorder %s25, 1
      %p211 = por %p209, %p210
      %p212 = scmp.ne.s32.totalorder %s203, %s204
      %p213 = scmp.eq.s32.totalorder %s25, 0
      %p214 = por %p212, %p213
      %p215 = scmp.ne.s32.totalorder %s203, %s204
      %p216 = scmp.eq.s32.totalorder %s26, 1
      %p217 = por %p215, %p216
      %p219 = scmp.ne.s32.totalorder %s204, %s218
      %p220 = scmp.eq.s32.totalorder %s26, 0
      %p221 = por %p219, %p220
      %s223 = sadd.s32 %s222, 1
      %p226 = scmp.eq.s32.totalorder %s20, 1
      %p227 = scmp.ne.s32.totalorder %s222, %s224
      %p228 = scmp.eq.s32.totalorder %s20, 0
      %p229 = por %p227, %p228
      %p230 = scmp.ne.s32.totalorder %s222, %s224
      %p231 = scmp.eq.s32.totalorder %s25, 1
      %p232 = por %p230, %p231
      %p233 = scmp.ne.s32.totalorder %s224, %s225
      %p234 = scmp.eq.s32.totalorder %s25, 0
      %p235 = por %p233, %p234
      %p236 = scmp.ne.s32.totalorder %s224, %s225
      %p237 = scmp.eq.s32.totalorder %s26, 1
      %p238 = por %p236, %p237
      %p240 = scmp.ne.s32.totalorder %s225, %s239
      %p241 = scmp.eq.s32.totalorder %s26, 0
      %p242 = por %p240, %p241
      %s244 = sadd.s32 %s243, 1
      %p247 = scmp.eq.s32.totalorder %s20, 1
      %p248 = scmp.ne.s32.totalorder %s243, %s245
      %p249 = scmp.eq.s32.totalorder %s20, 0
      %p250 = por %p248, %p249
      %p251 = scmp.ne.s32.totalorder %s243, %s245
      %p252 = scmp.eq.s32.totalorder %s25, 1
      %p253 = por %p251, %p252
      %p254 = scmp.ne.s32.totalorder %s245, %s246
      %p255 = scmp.eq.s32.totalorder %s25, 0
      %p256 = por %p254, %p255
      %p257 = scmp.ne.s32.totalorder %s245, %s246
      %p258 = scmp.eq.s32.totalorder %s26, 1
      %p259 = por %p257, %p258
      %p261 = scmp.ne.s32.totalorder %s246, %s260
      %p262 = scmp.eq.s32.totalorder %s26, 0
      %p263 = por %p261, %p262
      %s264 = ssub.s32 %s20, %s27
      %p265 = scmp.eq.s32.totalorder %s264, 0
      %s267 = sadd.s32 %s266, 1
      %s268 = scalar_select %p265, %s266, %s267
      %p271 = pneg %p265
      %p272 = scmp.eq.s32.totalorder %s20, 1
      %p273 = por %p271, %p272
      %p274 = scmp.ne.s32.totalorder %s266, %s269
      %p275 = scmp.eq.s32.totalorder %s20, 0
      %p276 = por %p274, %p275
      %p277 = scmp.ne.s32.totalorder %s266, %s269
      %p278 = scmp.eq.s32.totalorder %s25, 1
      %p279 = por %p277, %p278
      %p280 = scmp.ne.s32.totalorder %s269, %s270
      %p281 = scmp.eq.s32.totalorder %s25, 0
      %p282 = por %p280, %p281
      %p283 = scmp.ne.s32.totalorder %s269, %s270
      %p284 = scmp.eq.s32.totalorder %s26, 1
      %p285 = por %p283, %p284
      %p287 = scmp.ne.s32.totalorder %s270, %s286
      %p288 = scmp.eq.s32.totalorder %s26, 0
      %p289 = por %p287, %p288
      %p290 = scmp.le.s32.totalorder 1, %s20
      %p291 = scmp.lt.s32.totalorder %s20, 3
      %p292 = pnand %p290, %p291
      %p293 = pneg %p292
      // Predicated region
      $region9: #{critic_forward.1} parent=5 // pred_check
        _
      $region10: #{critic_forward.1} parent=5 // pred_check_branch
        %295 = sbr.rel (%p292) target = $region12
      $region11: #{critic_forward.1} parent=5 // pred_region
        %s296 = ssub.s32 %s20, 1
        // Predicated region
        $region13: #{critic_forward.1} parent=11 // pred_check
          %p297 = pneg %p67
        $region14: #{critic_forward.1} parent=11 // pred_check_branch
          %299 = sbr.rel (%p297) target = $region16
        $region15: #{critic_forward.1} parent=11 // pred_region
          %301 = vsyncadd [#allocation3], 0
          %s302 = sshll.u32 %s1, 4
          %s303 = int_to_ptr.hbm [resolvable:$true] %s302
          %s304 = sshll.u32 [#allocation2], 4
          %s305 = int_to_ptr.vmem [resolvable:$true] %s304
          %310 = dma.hbm_to_vmem [thread:$0]  %s303, 3072, %s305, [#allocation3], 192, 192, 12
        $region16: #{critic_forward.1} parent=11 // pred_fallthru
          _
        // Predicated region
        $region17: #{critic_forward.1} parent=11 // pred_check
          %p311 = pneg %p88
        $region18: #{critic_forward.1} parent=11 // pred_check_branch
          %313 = sbr.rel (%p311) target = $region20
        $region19: #{critic_forward.1} parent=11 // pred_region
          _
        $region20: #{critic_forward.1} parent=11 // pred_fallthru
          _
        // Predicated region
        $region21: #{critic_forward.1} parent=11 // pred_check
          %p314 = pneg %p109
        $region22: #{critic_forward.1} parent=11 // pred_check_branch
          %316 = sbr.rel (%p314) target = $region24
        $region23: #{critic_forward.1} parent=11 // pred_region
          %318 = vsyncadd [#allocation5], 0
          %s319 = sshll.u32 %s3, 4
          %s320 = int_to_ptr.hbm [resolvable:$true] %s319
          %s321 = sshll.u32 [#allocation4], 4
          %s322 = int_to_ptr.vmem [resolvable:$true] %s321
          %327 = dma.hbm_to_vmem [thread:$0]  %s320, 6144, %s322, [#allocation5], 128, 128, 8
        $region24: #{critic_forward.1} parent=11 // pred_fallthru
          _
        // Predicated region
        $region25: #{critic_forward.1} parent=11 // pred_check
          %p328 = pneg %p130
        $region26: #{critic_forward.1} parent=11 // pred_check_branch
          %330 = sbr.rel (%p328) target = $region28
        $region27: #{critic_forward.1} parent=11 // pred_region
          _
        $region28: #{critic_forward.1} parent=11 // pred_fallthru
          _
        // Predicated region
        $region29: #{critic_forward.1} parent=11 // pred_check
          %p331 = pneg %p151
        $region30: #{critic_forward.1} parent=11 // pred_check_branch
          %333 = sbr.rel (%p331) target = $region32
        $region31: #{critic_forward.1} parent=11 // pred_region
          %335 = vsyncadd [#allocation5], 0
          %s336 = sshll.u32 %s5, 4
          %s337 = int_to_ptr.hbm [resolvable:$true] %s336
          %s338 = sshll.u32 [#allocation6], 4
          %s339 = int_to_ptr.vmem [resolvable:$true] %s338
          %344 = dma.hbm_to_vmem [thread:$0]  %s337, 2048, %s339, [#allocation5], 64, 64, 4
        $region32: #{critic_forward.1} parent=11 // pred_fallthru
          _
        // Predicated region
        $region33: #{critic_forward.1} parent=11 // pred_check
          %p345 = pneg %p172
        $region34: #{critic_forward.1} parent=11 // pred_check_branch
          %347 = sbr.rel (%p345) target = $region36
        $region35: #{critic_forward.1} parent=11 // pred_region
          _
        $region36: #{critic_forward.1} parent=11 // pred_fallthru
          _
        // Predicated region
        $region37: #{critic_forward.1} parent=11 // pred_check
          %p348 = pneg %p193
        $region38: #{critic_forward.1} parent=11 // pred_check_branch
          %350 = sbr.rel (%p348) target = $region40
        $region39: #{critic_forward.1} parent=11 // pred_region
          %352 = vsyncadd [#allocation8], 0
          %s353 = sshll.u32 %s7, 4
          %s354 = int_to_ptr.hbm [resolvable:$true] %s353
          %s355 = sshll.u32 [#allocation7], 4
          %s356 = int_to_ptr.vmem [resolvable:$true] %s355
          %361 = dma.hbm_to_vmem [thread:$0]  %s354, 1024, %s356, [#allocation8], 64, 64, 4
        $region40: #{critic_forward.1} parent=11 // pred_fallthru
          _
        // Predicated region
        $region41: #{critic_forward.1} parent=11 // pred_check
          %p362 = pneg %p214
        $region42: #{critic_forward.1} parent=11 // pred_check_branch
          %364 = sbr.rel (%p362) target = $region44
        $region43: #{critic_forward.1} parent=11 // pred_region
          _
        $region44: #{critic_forward.1} parent=11 // pred_fallthru
          _
        // Predicated region
        $region45: #{critic_forward.1} parent=11 // pred_check
          %p365 = pneg %p235
        $region46: #{critic_forward.1} parent=11 // pred_check_branch
          %367 = sbr.rel (%p365) target = $region48
        $region47: #{critic_forward.1} parent=11 // pred_region
          %369 = vsyncadd [#allocation8], 0
          %s370 = sshll.u32 %s9, 4
          %s371 = int_to_ptr.hbm [resolvable:$true] %s370
          %s372 = sshll.u32 [#allocation9], 4
          %s373 = int_to_ptr.vmem [resolvable:$true] %s372
          %378 = dma.hbm_to_vmem [thread:$0]  %s371, 1024, %s373, [#allocation8], 64, 64, 4
        $region48: #{critic_forward.1} parent=11 // pred_fallthru
          _
        // Predicated region
        $region49: #{critic_forward.1} parent=11 // pred_check
          %p379 = pneg %p256
        $region50: #{critic_forward.1} parent=11 // pred_check_branch
          %381 = sbr.rel (%p379) target = $region52
        $region51: #{critic_forward.1} parent=11 // pred_region
          _
        $region52: #{critic_forward.1} parent=11 // pred_fallthru
          _
      $region12: #{critic_forward.1} parent=5 // pred_fallthru
        _
      %p382 = scmp.lt.s32.totalorder %s20, 2
      // Predicated region
      $region53: #{critic_forward.1} parent=5 // pred_check
        %p383 = pneg %p382
      $region54: #{critic_forward.1} parent=5 // pred_check_branch
        %385 = sbr.rel (%p383) target = $region56
      $region55: #{critic_forward.1} parent=5 // pred_region
        // Predicated region
        $region57: #{critic_forward.1} parent=55 // pred_check
          %p386 = pneg %p40
        $region58: #{critic_forward.1} parent=55 // pred_check_branch
          %388 = sbr.rel (%p386) target = $region60
        $region59: #{critic_forward.1} parent=55 // pred_region
          %s389 = smul.u32 2, %s20
          %p390 = scmp.lt.s32.totalorder %s389, 3
          %s391 = scalar_select %p390, %s389, 3
          %s392 = smul.addr %s391, 4
          %s393 = scalar_lea.vmem %s0, %s392
          %s394 = smul.u32 2, %s20
        $region60: #{critic_forward.1} parent=55 // pred_fallthru
          _
      $region56: #{critic_forward.1} parent=5 // pred_fallthru
        _
      %p395 = scmp.le.s32.totalorder 1, %s20
      %p396 = scmp.lt.s32.totalorder %s20, 3
      %p397 = pnand %p395, %p396
      %p398 = pneg %p397
      // Predicated region
      $region61: #{critic_forward.1} parent=5 // pred_check
        _
      $region62: #{critic_forward.1} parent=5 // pred_check_branch
        %400 = sbr.rel (%p397) target = $region64
      $region63: #{critic_forward.1} parent=5 // pred_region
        %s401 = ssub.s32 %s20, 1
        // Predicated region
        $region65: #{critic_forward.1} parent=63 // pred_check
          %p402 = pneg %p67
        $region66: #{critic_forward.1} parent=63 // pred_check_branch
          %404 = sbr.rel (%p402) target = $region68
        $region67: #{critic_forward.1} parent=63 // pred_region
          %406 = dma.done [#allocation3], 3072
        $region68: #{critic_forward.1} parent=63 // pred_fallthru
          _
        // Predicated region
        $region69: #{critic_forward.1} parent=63 // pred_check
          %p407 = pneg %p109
        $region70: #{critic_forward.1} parent=63 // pred_check_branch
          %409 = sbr.rel (%p407) target = $region72
        $region71: #{critic_forward.1} parent=63 // pred_region
          %411 = dma.done [#allocation5], 6144
        $region72: #{critic_forward.1} parent=63 // pred_fallthru
          _
        // Predicated region
        $region73: #{critic_forward.1} parent=63 // pred_check
          %p412 = pneg %p151
        $region74: #{critic_forward.1} parent=63 // pred_check_branch
          %414 = sbr.rel (%p412) target = $region76
        $region75: #{critic_forward.1} parent=63 // pred_region
          %416 = dma.done [#allocation5], 2048
        $region76: #{critic_forward.1} parent=63 // pred_fallthru
          _
        // Predicated region
        $region77: #{critic_forward.1} parent=63 // pred_check
          %p417 = pneg %p193
        $region78: #{critic_forward.1} parent=63 // pred_check_branch
          %419 = sbr.rel (%p417) target = $region80
        $region79: #{critic_forward.1} parent=63 // pred_region
          %421 = dma.done [#allocation8], 1024
        $region80: #{critic_forward.1} parent=63 // pred_fallthru
          _
        // Predicated region
        $region81: #{critic_forward.1} parent=63 // pred_check
          %p422 = pneg %p235
        $region82: #{critic_forward.1} parent=63 // pred_check_branch
          %424 = sbr.rel (%p422) target = $region84
        $region83: #{critic_forward.1} parent=63 // pred_region
          %426 = dma.done [#allocation8], 1024
        $region84: #{critic_forward.1} parent=63 // pred_fallthru
          _
        %s427 = smul.u32 2, %s25
        %p428 = scmp.lt.s32.totalorder %s427, 3
        %s429 = scalar_select %p428, %s427, 3
        %s430 = smul.addr %s429, 4
        %s431 = scalar_lea.vmem %s0, %s430
        %p432 = pneg %p46
        %p433 = pneg %p43
        %p434 = pneg %p67
        %p435 = pneg %p64
        %p436 = pneg %p88
        %p437 = pneg %p85
        %p438 = pneg %p109
        %p439 = pneg %p106
        %p440 = pneg %p130
        %p441 = pneg %p127
        %p442 = pneg %p151
        %p443 = pneg %p148
        %p444 = pneg %p172
        %p445 = pneg %p169
        %p446 = pneg %p193
        %p447 = pneg %p190
        %p448 = pneg %p214
        %p449 = pneg %p211
        %p450 = pneg %p235
        %p451 = pneg %p232
        %p452 = pneg %p256
        %p453 = pneg %p253
        %p454 = pneg %p282
        %p455 = pneg %p279
        %s456 = smul.u32 2, %s25
        %p457 = scmp.lt.s32.totalorder %s456, 3
        %s458 = scalar_select %p457, %s456, 3
        %s459 = smul.addr %s458, 4
        %s460 = scalar_lea.vmem %s11, %s459
        %s461 = smul.u32 2, %s25
        %p462 = scmp.lt.s32.totalorder %s461, 3
        %s463 = scalar_select %p462, %s461, 3
        %s464 = smul.addr %s463, 4
        %s465 = scalar_lea.vmem %s0, %s464
        %s466 = smul.u32 2, %s25
        %s467 = smul.u32 2, %s25
        %p468 = scmp.lt.s32.totalorder %s467, 3
        %s469 = scalar_select %p468, %s467, 3
        %s470 = smul.addr %s469, 4
        %s471 = scalar_lea.vmem %s11, %s470
        %s472 = smul.u32 2, %s25
        %v473 = vld [vmem:[%s465] sm:$0xf]
        %v474 = vld [vmem:[%s465 + $0x4] sm:$0xf]
        %v475 = vld [vmem:[#allocation2] sm:$0xff]
        %v476 = vld [vmem:[#allocation2 + $0x8] sm:$0xf]
        %v477 = vld [vmem:[#allocation2 + $0xc] sm:$0xff]
        %v478 = vld [vmem:[#allocation2 + $0x14] sm:$0xf]
        %v479 = vld [vmem:[#allocation2 + $0x18] sm:$0xff]
        %v480 = vld [vmem:[#allocation2 + $0x20] sm:$0xf]
        %v481 = vld [vmem:[#allocation2 + $0x24] sm:$0xff]
        %v482 = vld [vmem:[#allocation2 + $0x2c] sm:$0xf]
        %v483 = vld [vmem:[#allocation2 + $0x30] sm:$0xff]
        %v484 = vld [vmem:[#allocation2 + $0x38] sm:$0xf]
        %v485 = vld [vmem:[#allocation2 + $0x3c] sm:$0xff]
        %v486 = vld [vmem:[#allocation2 + $0x44] sm:$0xf]
        %v487 = vld [vmem:[#allocation2 + $0x48] sm:$0xff]
        %v488 = vld [vmem:[#allocation2 + $0x50] sm:$0xf]
        %v489 = vld [vmem:[#allocation2 + $0x54] sm:$0xff]
        %v490 = vld [vmem:[#allocation2 + $0x5c] sm:$0xf]
        %v491 = vld [vmem:[#allocation2 + $0x60] sm:$0xff]
        %v492 = vld [vmem:[#allocation2 + $0x68] sm:$0xf]
        %v493 = vld [vmem:[#allocation2 + $0x6c] sm:$0xff]
        %v494 = vld [vmem:[#allocation2 + $0x74] sm:$0xf]
        %v495 = vld [vmem:[#allocation2 + $0x78] sm:$0xff]
        %v496 = vld [vmem:[#allocation2 + $0x80] sm:$0xf]
        %v497 = vld [vmem:[#allocation2 + $0x84] sm:$0xff]
        %v498 = vld [vmem:[#allocation2 + $0x8c] sm:$0xf]
        %v499 = vld [vmem:[#allocation2 + $0x90] sm:$0xff]
        %v500 = vld [vmem:[#allocation2 + $0x98] sm:$0xf]
        %v501 = vld [vmem:[#allocation2 + $0x9c] sm:$0xff]
        %v502 = vld [vmem:[#allocation2 + $0xa4] sm:$0xf]
        %v503 = vld [vmem:[#allocation2 + $0xa8] sm:$0xff]
        %v504 = vld [vmem:[#allocation2 + $0xb0] sm:$0xf]
        %v505 = vld [vmem:[#allocation2 + $0xb4] sm:$0xff]
        %v506 = vld [vmem:[#allocation2 + $0xbc] sm:$0xf]
        %v507 = vld [vmem:[%s2] sm:$0x7]
        %v509 = vperm.slane %v507, 0
        %v510 = vperm.slane %v507, 1
        %v511 = vperm.slane %v507, 2
        %v517 = vunpack.c.l.b16 %v473
        %v518 = vunpack.c.l.b16 %v474
        %v519 = vpack.c.b16 %v518, %v517
        %v553 = vunpack.c.l.b16 %v475
        %v554 = vunpack.c.h.b16 %v475
        %v555 = vunpack.c.l.b16 %v476
        %v556 = vunpack.c.l.b16 %v477
        %v557 = vunpack.c.h.b16 %v477
        %v558 = vunpack.c.l.b16 %v478
        %v559 = vunpack.c.l.b16 %v479
        %v560 = vunpack.c.h.b16 %v479
        %v561 = vunpack.c.l.b16 %v480
        %v562 = vunpack.c.l.b16 %v481
        %v563 = vunpack.c.h.b16 %v481
        %v564 = vunpack.c.l.b16 %v482
        %v565 = vunpack.c.l.b16 %v483
        %v566 = vunpack.c.h.b16 %v483
        %v567 = vunpack.c.l.b16 %v484
        %v568 = vunpack.c.l.b16 %v485
        %v569 = vunpack.c.h.b16 %v485
        %v570 = vunpack.c.l.b16 %v486
        %v571 = vunpack.c.l.b16 %v487
        %v572 = vunpack.c.h.b16 %v487
        %v573 = vunpack.c.l.b16 %v488
        %v574 = vunpack.c.l.b16 %v489
        %v575 = vunpack.c.h.b16 %v489
        %v576 = vunpack.c.l.b16 %v490
        %v577 = vunpack.c.l.b16 %v491
        %v578 = vunpack.c.h.b16 %v491
        %v579 = vunpack.c.l.b16 %v492
        %v580 = vunpack.c.l.b16 %v493
        %v581 = vunpack.c.h.b16 %v493
        %v582 = vunpack.c.l.b16 %v494
        %v583 = vunpack.c.l.b16 %v495
        %v584 = vunpack.c.h.b16 %v495
        %v585 = vunpack.c.l.b16 %v496
        %v586 = vunpack.c.l.b16 %v497
        %v587 = vunpack.c.h.b16 %v497
        %v588 = vunpack.c.l.b16 %v498
        %v589 = vunpack.c.l.b16 %v499
        %v590 = vunpack.c.h.b16 %v499
        %v591 = vunpack.c.l.b16 %v500
        %v592 = vunpack.c.l.b16 %v501
        %v593 = vunpack.c.h.b16 %v501
        %v594 = vunpack.c.l.b16 %v502
        %v595 = vunpack.c.l.b16 %v503
        %v596 = vunpack.c.h.b16 %v503
        %v597 = vunpack.c.l.b16 %v504
        %v598 = vunpack.c.l.b16 %v505
        %v599 = vunpack.c.h.b16 %v505
        %v600 = vunpack.c.l.b16 %v506
        %v601 = vpack.c.b16 %v556, %v553
        %v602 = vpack.c.b16 %v557, %v554
        %v603 = vpack.c.b16 %v558, %v555
        %v604 = vpack.c.b16 %v562, %v559
        %v605 = vpack.c.b16 %v563, %v560
        %v606 = vpack.c.b16 %v564, %v561
        %v607 = vpack.c.b16 %v568, %v565
        %v608 = vpack.c.b16 %v569, %v566
        %v609 = vpack.c.b16 %v570, %v567
        %v610 = vpack.c.b16 %v574, %v571
        %v611 = vpack.c.b16 %v575, %v572
        %v612 = vpack.c.b16 %v576, %v573
        %v613 = vpack.c.b16 %v580, %v577
        %v614 = vpack.c.b16 %v581, %v578
        %v615 = vpack.c.b16 %v582, %v579
        %v616 = vpack.c.b16 %v586, %v583
        %v617 = vpack.c.b16 %v587, %v584
        %v618 = vpack.c.b16 %v588, %v585
        %v619 = vpack.c.b16 %v592, %v589
        %v620 = vpack.c.b16 %v593, %v590
        %v621 = vpack.c.b16 %v594, %v591
        %v622 = vpack.c.b16 %v598, %v595
        %v623 = vpack.c.b16 %v599, %v596
        %v624 = vpack.c.b16 %v600, %v597
        %649 = vmatpush.bf16.msra.mxu0 %v622
        %650 = vmatpush.bf16.msra.mxu0 %v619
        %651 = vmatpush.bf16.msra.mxu0 %v616
        %652 = vmatpush.bf16.msra.mxu0 %v613
        %653 = vmatpush.bf16.msra.mxu0 %v610
        %654 = vmatpush.bf16.msra.mxu0 %v607
        %655 = vmatpush.bf16.msra.mxu0 %v604
        %656 = vmatpush.bf16.msra.mxu0 %v601
        %657 = vmatmul.bf16.gmra.mxu0 %v519
        %v658 = vpop.f32.mrf.mxu0
        %v659 = vadd.f32 %v509, %v658
        %v660 = vpop.f32.mrf.mxu0
        %v661 = vadd.f32 %v509, %v660
        %662 = vdwg.mxu0
        %663 = vmatpush.bf16.msra.mxu0 %v623
        %664 = vmatpush.bf16.msra.mxu0 %v620
        %665 = vmatpush.bf16.msra.mxu0 %v617
        %666 = vmatpush.bf16.msra.mxu0 %v614
        %667 = vmatpush.bf16.msra.mxu0 %v611
        %668 = vmatpush.bf16.msra.mxu0 %v608
        %669 = vmatpush.bf16.msra.mxu0 %v605
        %670 = vmatpush.bf16.msra.mxu0 %v602
        %671 = vmatmul.bf16.gmra.mxu0 %v519
        %v672 = vpop.f32.mrf.mxu0
        %v673 = vadd.f32 %v510, %v672
        %v674 = vpop.f32.mrf.mxu0
        %v675 = vadd.f32 %v510, %v674
        %676 = vdwg.mxu0
        %677 = vmatpush.bf16.msra.mxu0 %v624
        %678 = vmatpush.bf16.msra.mxu0 %v621
        %679 = vmatpush.bf16.msra.mxu0 %v618
        %680 = vmatpush.bf16.msra.mxu0 %v615
        %681 = vmatpush.bf16.msra.mxu0 %v612
        %682 = vmatpush.bf16.msra.mxu0 %v609
        %683 = vmatpush.bf16.msra.mxu0 %v606
        %684 = vmatpush.bf16.msra.mxu0 %v603
        %685 = vmatmul.bf16.gmra.mxu0 %v519
        %v686 = vpop.f32.mrf.mxu0
        %v687 = vadd.f32 %v511, %v686
        %v688 = vpop.f32.mrf.mxu0
        %v689 = vadd.f32 %v511, %v688
        %690 = vdwg.mxu0
        %v691 = vmax.f32 %v659, 0.0
        %v692 = vmax.f32 %v673, 0.0
        %v693 = vmax.f32 %v687, 0.0
        %v694 = vmax.f32 %v661, 0.0
        %v695 = vmax.f32 %v675, 0.0
        %v696 = vmax.f32 %v689, 0.0
        %v697 = vpack.c.bf16 %v694, %v691
        %v698 = vpack.c.bf16 %v695, %v692
        %v699 = vpack.c.bf16 %v696, %v693
        %v700 = vld [vmem:[#allocation4] sm:$0xff]
        %v701 = vld [vmem:[#allocation4 + $0x8] sm:$0xff]
        %v702 = vld [vmem:[#allocation4 + $0x10] sm:$0xff]
        %v703 = vld [vmem:[#allocation4 + $0x18] sm:$0xff]
        %v704 = vld [vmem:[#allocation4 + $0x20] sm:$0xff]
        %v705 = vld [vmem:[#allocation4 + $0x28] sm:$0xff]
        %v706 = vld [vmem:[#allocation4 + $0x30] sm:$0xff]
        %v707 = vld [vmem:[#allocation4 + $0x38] sm:$0xff]
        %v708 = vld [vmem:[#allocation4 + $0x40] sm:$0xff]
        %v709 = vld [vmem:[#allocation4 + $0x48] sm:$0xff]
        %v710 = vld [vmem:[#allocation4 + $0x50] sm:$0xff]
        %v711 = vld [vmem:[#allocation4 + $0x58] sm:$0xff]
        %v712 = vld [vmem:[#allocation4 + $0x60] sm:$0xff]
        %v713 = vld [vmem:[#allocation4 + $0x68] sm:$0xff]
        %v714 = vld [vmem:[#allocation4 + $0x70] sm:$0xff]
        %v715 = vld [vmem:[#allocation4 + $0x78] sm:$0xff]
        %v716 = vld [vmem:[#allocation4 + $0x80] sm:$0xff]
        %v717 = vld [vmem:[#allocation4 + $0x88] sm:$0xff]
        %v718 = vld [vmem:[#allocation4 + $0x90] sm:$0xff]
        %v719 = vld [vmem:[#allocation4 + $0x98] sm:$0xff]
        %v720 = vld [vmem:[#allocation4 + $0xa0] sm:$0xff]
        %v721 = vld [vmem:[#allocation4 + $0xa8] sm:$0xff]
        %v722 = vld [vmem:[#allocation4 + $0xb0] sm:$0xff]
        %v723 = vld [vmem:[#allocation4 + $0xb8] sm:$0xff]
        %v724 = vld [vmem:[#allocation4 + $0xc0] sm:$0xff]
        %v725 = vld [vmem:[#allocation4 + $0xc8] sm:$0xff]
        %v726 = vld [vmem:[#allocation4 + $0xd0] sm:$0xff]
        %v727 = vld [vmem:[#allocation4 + $0xd8] sm:$0xff]
        %v728 = vld [vmem:[#allocation4 + $0xe0] sm:$0xff]
        %v729 = vld [vmem:[#allocation4 + $0xe8] sm:$0xff]
        %v730 = vld [vmem:[#allocation4 + $0xf0] sm:$0xff]
        %v731 = vld [vmem:[#allocation4 + $0xf8] sm:$0xff]
        %v732 = vld [vmem:[#allocation4 + $0x100] sm:$0xff]
        %v733 = vld [vmem:[#allocation4 + $0x108] sm:$0xff]
        %v734 = vld [vmem:[#allocation4 + $0x110] sm:$0xff]
        %v735 = vld [vmem:[#allocation4 + $0x118] sm:$0xff]
        %v736 = vld [vmem:[#allocation4 + $0x120] sm:$0xff]
        %v737 = vld [vmem:[#allocation4 + $0x128] sm:$0xff]
        %v738 = vld [vmem:[#allocation4 + $0x130] sm:$0xff]
        %v739 = vld [vmem:[#allocation4 + $0x138] sm:$0xff]
        %v740 = vld [vmem:[#allocation4 + $0x140] sm:$0xff]
        %v741 = vld [vmem:[#allocation4 + $0x148] sm:$0xff]
        %v742 = vld [vmem:[#allocation4 + $0x150] sm:$0xff]
        %v743 = vld [vmem:[#allocation4 + $0x158] sm:$0xff]
        %v744 = vld [vmem:[#allocation4 + $0x160] sm:$0xff]
        %v745 = vld [vmem:[#allocation4 + $0x168] sm:$0xff]
        %v746 = vld [vmem:[#allocation4 + $0x170] sm:$0xff]
        %v747 = vld [vmem:[#allocation4 + $0x178] sm:$0xff]
        %v748 = vld [vmem:[%s4] sm:$0x3]
        %v750 = vperm.slane %v748, 0
        %v751 = vperm.slane %v748, 1
        %v802 = vunpack.c.l.b16 %v700
        %v803 = vunpack.c.h.b16 %v700
        %v804 = vunpack.c.l.b16 %v701
        %v805 = vunpack.c.h.b16 %v701
        %v806 = vunpack.c.l.b16 %v702
        %v807 = vunpack.c.h.b16 %v702
        %v808 = vunpack.c.l.b16 %v703
        %v809 = vunpack.c.h.b16 %v703
        %v810 = vunpack.c.l.b16 %v704
        %v811 = vunpack.c.h.b16 %v704
        %v812 = vunpack.c.l.b16 %v705
        %v813 = vunpack.c.h.b16 %v705
        %v814 = vunpack.c.l.b16 %v706
        %v815 = vunpack.c.h.b16 %v706
        %v816 = vunpack.c.l.b16 %v707
        %v817 = vunpack.c.h.b16 %v707
        %v818 = vunpack.c.l.b16 %v708
        %v819 = vunpack.c.h.b16 %v708
        %v820 = vunpack.c.l.b16 %v709
        %v821 = vunpack.c.h.b16 %v709
        %v822 = vunpack.c.l.b16 %v710
        %v823 = vunpack.c.h.b16 %v710
        %v824 = vunpack.c.l.b16 %v711
        %v825 = vunpack.c.h.b16 %v711
        %v826 = vunpack.c.l.b16 %v712
        %v827 = vunpack.c.h.b16 %v712
        %v828 = vunpack.c.l.b16 %v713
        %v829 = vunpack.c.h.b16 %v713
        %v830 = vunpack.c.l.b16 %v714
        %v831 = vunpack.c.h.b16 %v714
        %v832 = vunpack.c.l.b16 %v715
        %v833 = vunpack.c.h.b16 %v715
        %v834 = vunpack.c.l.b16 %v716
        %v835 = vunpack.c.h.b16 %v716
        %v836 = vunpack.c.l.b16 %v717
        %v837 = vunpack.c.h.b16 %v717
        %v838 = vunpack.c.l.b16 %v718
        %v839 = vunpack.c.h.b16 %v718
        %v840 = vunpack.c.l.b16 %v719
        %v841 = vunpack.c.h.b16 %v719
        %v842 = vunpack.c.l.b16 %v720
        %v843 = vunpack.c.h.b16 %v720
        %v844 = vunpack.c.l.b16 %v721
        %v845 = vunpack.c.h.b16 %v721
        %v846 = vunpack.c.l.b16 %v722
        %v847 = vunpack.c.h.b16 %v722
        %v848 = vunpack.c.l.b16 %v723
        %v849 = vunpack.c.h.b16 %v723
        %v850 = vunpack.c.l.b16 %v724
        %v851 = vunpack.c.h.b16 %v724
        %v852 = vunpack.c.l.b16 %v725
        %v853 = vunpack.c.h.b16 %v725
        %v854 = vunpack.c.l.b16 %v726
        %v855 = vunpack.c.h.b16 %v726
        %v856 = vunpack.c.l.b16 %v727
        %v857 = vunpack.c.h.b16 %v727
        %v858 = vunpack.c.l.b16 %v728
        %v859 = vunpack.c.h.b16 %v728
        %v860 = vunpack.c.l.b16 %v729
        %v861 = vunpack.c.h.b16 %v729
        %v862 = vunpack.c.l.b16 %v730
        %v863 = vunpack.c.h.b16 %v730
        %v864 = vunpack.c.l.b16 %v731
        %v865 = vunpack.c.h.b16 %v731
        %v866 = vunpack.c.l.b16 %v732
        %v867 = vunpack.c.h.b16 %v732
        %v868 = vunpack.c.l.b16 %v733
        %v869 = vunpack.c.h.b16 %v733
        %v870 = vunpack.c.l.b16 %v734
        %v871 = vunpack.c.h.b16 %v734
        %v872 = vunpack.c.l.b16 %v735
        %v873 = vunpack.c.h.b16 %v735
        %v874 = vunpack.c.l.b16 %v736
        %v875 = vunpack.c.h.b16 %v736
        %v876 = vunpack.c.l.b16 %v737
        %v877 = vunpack.c.h.b16 %v737
        %v878 = vunpack.c.l.b16 %v738
        %v879 = vunpack.c.h.b16 %v738
        %v880 = vunpack.c.l.b16 %v739
        %v881 = vunpack.c.h.b16 %v739
        %v882 = vunpack.c.l.b16 %v740
        %v883 = vunpack.c.h.b16 %v740
        %v884 = vunpack.c.l.b16 %v741
        %v885 = vunpack.c.h.b16 %v741
        %v886 = vunpack.c.l.b16 %v742
        %v887 = vunpack.c.h.b16 %v742
        %v888 = vunpack.c.l.b16 %v743
        %v889 = vunpack.c.h.b16 %v743
        %v890 = vunpack.c.l.b16 %v744
        %v891 = vunpack.c.h.b16 %v744
        %v892 = vunpack.c.l.b16 %v745
        %v893 = vunpack.c.h.b16 %v745
        %v894 = vunpack.c.l.b16 %v746
        %v895 = vunpack.c.h.b16 %v746
        %v896 = vunpack.c.l.b16 %v747
        %v897 = vunpack.c.h.b16 %v747
        %v898 = vpack.c.b16 %v804, %v802
        %v899 = vpack.c.b16 %v805, %v803
        %v900 = vpack.c.b16 %v808, %v806
        %v901 = vpack.c.b16 %v809, %v807
        %v902 = vpack.c.b16 %v812, %v810
        %v903 = vpack.c.b16 %v813, %v811
        %v904 = vpack.c.b16 %v816, %v814
        %v905 = vpack.c.b16 %v817, %v815
        %v906 = vpack.c.b16 %v820, %v818
        %v907 = vpack.c.b16 %v821, %v819
        %v908 = vpack.c.b16 %v824, %v822
        %v909 = vpack.c.b16 %v825, %v823
        %v910 = vpack.c.b16 %v828, %v826
        %v911 = vpack.c.b16 %v829, %v827
        %v912 = vpack.c.b16 %v832, %v830
        %v913 = vpack.c.b16 %v833, %v831
        %v914 = vpack.c.b16 %v836, %v834
        %v915 = vpack.c.b16 %v837, %v835
        %v916 = vpack.c.b16 %v840, %v838
        %v917 = vpack.c.b16 %v841, %v839
        %v918 = vpack.c.b16 %v844, %v842
        %v919 = vpack.c.b16 %v845, %v843
        %v920 = vpack.c.b16 %v848, %v846
        %v921 = vpack.c.b16 %v849, %v847
        %v922 = vpack.c.b16 %v852, %v850
        %v923 = vpack.c.b16 %v853, %v851
        %v924 = vpack.c.b16 %v856, %v854
        %v925 = vpack.c.b16 %v857, %v855
        %v926 = vpack.c.b16 %v860, %v858
        %v927 = vpack.c.b16 %v861, %v859
        %v928 = vpack.c.b16 %v864, %v862
        %v929 = vpack.c.b16 %v865, %v863
        %v930 = vpack.c.b16 %v868, %v866
        %v931 = vpack.c.b16 %v869, %v867
        %v932 = vpack.c.b16 %v872, %v870
        %v933 = vpack.c.b16 %v873, %v871
        %v934 = vpack.c.b16 %v876, %v874
        %v935 = vpack.c.b16 %v877, %v875
        %v936 = vpack.c.b16 %v880, %v878
        %v937 = vpack.c.b16 %v881, %v879
        %v938 = vpack.c.b16 %v884, %v882
        %v939 = vpack.c.b16 %v885, %v883
        %v940 = vpack.c.b16 %v888, %v886
        %v941 = vpack.c.b16 %v889, %v887
        %v942 = vpack.c.b16 %v892, %v890
        %v943 = vpack.c.b16 %v893, %v891
        %v944 = vpack.c.b16 %v896, %v894
        %v945 = vpack.c.b16 %v897, %v895
        %994 = vmatpush.bf16.msra.mxu0 %v912
        %995 = vmatpush.bf16.msra.mxu0 %v910
        %996 = vmatpush.bf16.msra.mxu0 %v908
        %997 = vmatpush.bf16.msra.mxu0 %v906
        %998 = vmatpush.bf16.msra.mxu0 %v904
        %999 = vmatpush.bf16.msra.mxu0 %v902
        %1000 = vmatpush.bf16.msra.mxu0 %v900
        %1001 = vmatpush.bf16.msra.mxu0 %v898
        %1002 = vmatmul.bf16.gmra.mxu0 %v697
        %v1003 = vpop.f32.mrf.mxu0
        %v1004 = vadd.f32 %v750, %v1003
        %v1005 = vpop.f32.mrf.mxu0
        %v1006 = vadd.f32 %v750, %v1005
        %1007 = vdwg.mxu0
        %1008 = vmatpush.bf16.msra.mxu0 %v928
        %1009 = vmatpush.bf16.msra.mxu0 %v926
        %1010 = vmatpush.bf16.msra.mxu0 %v924
        %1011 = vmatpush.bf16.msra.mxu0 %v922
        %1012 = vmatpush.bf16.msra.mxu0 %v920
        %1013 = vmatpush.bf16.msra.mxu0 %v918
        %1014 = vmatpush.bf16.msra.mxu0 %v916
        %1015 = vmatpush.bf16.msra.mxu0 %v914
        %1016 = vmatmul.bf16.gmra.mxu0 %v698
        %v1017 = vpop.f32.mrf.mxu0
        %v1018 = vadd.f32 %v1004, %v1017
        %v1019 = vpop.f32.mrf.mxu0
        %v1020 = vadd.f32 %v1006, %v1019
        %1021 = vdwg.mxu0
        %1022 = vmatpush.bf16.msra.mxu0 %v944
        %1023 = vmatpush.bf16.msra.mxu0 %v942
        %1024 = vmatpush.bf16.msra.mxu0 %v940
        %1025 = vmatpush.bf16.msra.mxu0 %v938
        %1026 = vmatpush.bf16.msra.mxu0 %v936
        %1027 = vmatpush.bf16.msra.mxu0 %v934
        %1028 = vmatpush.bf16.msra.mxu0 %v932
        %1029 = vmatpush.bf16.msra.mxu0 %v930
        %1030 = vmatmul.bf16.gmra.mxu0 %v699
        %v1031 = vpop.f32.mrf.mxu0
        %v1032 = vadd.f32 %v1018, %v1031
        %v1033 = vpop.f32.mrf.mxu0
        %v1034 = vadd.f32 %v1020, %v1033
        %1035 = vdwg.mxu0
        %1036 = vmatpush.bf16.msra.mxu0 %v913
        %1037 = vmatpush.bf16.msra.mxu0 %v911
        %1038 = vmatpush.bf16.msra.mxu0 %v909
        %1039 = vmatpush.bf16.msra.mxu0 %v907
        %1040 = vmatpush.bf16.msra.mxu0 %v905
        %1041 = vmatpush.bf16.msra.mxu0 %v903
        %1042 = vmatpush.bf16.msra.mxu0 %v901
        %1043 = vmatpush.bf16.msra.mxu0 %v899
        %1044 = vmatmul.bf16.gmra.mxu0 %v697
        %v1045 = vpop.f32.mrf.mxu0
        %v1046 = vadd.f32 %v751, %v1045
        %v1047 = vpop.f32.mrf.mxu0
        %v1048 = vadd.f32 %v751, %v1047
        %1049 = vdwg.mxu0
        %1050 = vmatpush.bf16.msra.mxu0 %v929
        %1051 = vmatpush.bf16.msra.mxu0 %v927
        %1052 = vmatpush.bf16.msra.mxu0 %v925
        %1053 = vmatpush.bf16.msra.mxu0 %v923
        %1054 = vmatpush.bf16.msra.mxu0 %v921
        %1055 = vmatpush.bf16.msra.mxu0 %v919
        %1056 = vmatpush.bf16.msra.mxu0 %v917
        %1057 = vmatpush.bf16.msra.mxu0 %v915
        %1058 = vmatmul.bf16.gmra.mxu0 %v698
        %v1059 = vpop.f32.mrf.mxu0
        %v1060 = vadd.f32 %v1046, %v1059
        %v1061 = vpop.f32.mrf.mxu0
        %v1062 = vadd.f32 %v1048, %v1061
        %1063 = vdwg.mxu0
        %1064 = vmatpush.bf16.msra.mxu0 %v945
        %1065 = vmatpush.bf16.msra.mxu0 %v943
        %1066 = vmatpush.bf16.msra.mxu0 %v941
        %1067 = vmatpush.bf16.msra.mxu0 %v939
        %1068 = vmatpush.bf16.msra.mxu0 %v937
        %1069 = vmatpush.bf16.msra.mxu0 %v935
        %1070 = vmatpush.bf16.msra.mxu0 %v933
        %1071 = vmatpush.bf16.msra.mxu0 %v931
        %1072 = vmatmul.bf16.gmra.mxu0 %v699
        %v1073 = vpop.f32.mrf.mxu0
        %v1074 = vadd.f32 %v1060, %v1073
        %v1075 = vpop.f32.mrf.mxu0
        %v1076 = vadd.f32 %v1062, %v1075
        %1077 = vdwg.mxu0
        %v1078 = vmax.f32 %v1032, 0.0
        %v1079 = vmax.f32 %v1074, 0.0
        %v1080 = vmax.f32 %v1034, 0.0
        %v1081 = vmax.f32 %v1076, 0.0
        %v1082 = vpack.c.bf16 %v1080, %v1078
        %v1083 = vpack.c.bf16 %v1081, %v1079
        %v1084 = vld [vmem:[#allocation6] sm:$0xf]
        %v1085 = vld [vmem:[#allocation6 + $0x4] sm:$0xf]
        %v1086 = vld [vmem:[#allocation6 + $0x8] sm:$0xf]
        %v1087 = vld [vmem:[#allocation6 + $0xc] sm:$0xf]
        %v1088 = vld [vmem:[#allocation6 + $0x10] sm:$0xf]
        %v1089 = vld [vmem:[#allocation6 + $0x14] sm:$0xf]
        %v1090 = vld [vmem:[#allocation6 + $0x18] sm:$0xf]
        %v1091 = vld [vmem:[#allocation6 + $0x1c] sm:$0xf]
        %v1092 = vld [vmem:[#allocation6 + $0x20] sm:$0xf]
        %v1093 = vld [vmem:[#allocation6 + $0x24] sm:$0xf]
        %v1094 = vld [vmem:[#allocation6 + $0x28] sm:$0xf]
        %v1095 = vld [vmem:[#allocation6 + $0x2c] sm:$0xf]
        %v1096 = vld [vmem:[#allocation6 + $0x30] sm:$0xf]
        %v1097 = vld [vmem:[#allocation6 + $0x34] sm:$0xf]
        %v1098 = vld [vmem:[#allocation6 + $0x38] sm:$0xf]
        %v1099 = vld [vmem:[#allocation6 + $0x3c] sm:$0xf]
        %v1100 = vld [vmem:[#allocation6 + $0x40] sm:$0xf]
        %v1101 = vld [vmem:[#allocation6 + $0x44] sm:$0xf]
        %v1102 = vld [vmem:[#allocation6 + $0x48] sm:$0xf]
        %v1103 = vld [vmem:[#allocation6 + $0x4c] sm:$0xf]
        %v1104 = vld [vmem:[#allocation6 + $0x50] sm:$0xf]
        %v1105 = vld [vmem:[#allocation6 + $0x54] sm:$0xf]
        %v1106 = vld [vmem:[#allocation6 + $0x58] sm:$0xf]
        %v1107 = vld [vmem:[#allocation6 + $0x5c] sm:$0xf]
        %v1108 = vld [vmem:[#allocation6 + $0x60] sm:$0xf]
        %v1109 = vld [vmem:[#allocation6 + $0x64] sm:$0xf]
        %v1110 = vld [vmem:[#allocation6 + $0x68] sm:$0xf]
        %v1111 = vld [vmem:[#allocation6 + $0x6c] sm:$0xf]
        %v1112 = vld [vmem:[#allocation6 + $0x70] sm:$0xf]
        %v1113 = vld [vmem:[#allocation6 + $0x74] sm:$0xf]
        %v1114 = vld [vmem:[#allocation6 + $0x78] sm:$0xf]
        %v1115 = vld [vmem:[#allocation6 + $0x7c] sm:$0xf]
        %v1116 = vld [vmem:[%s6] sm:$0x1]
        %v1118 = vperm.slane %v1116, 0
        %v1152 = vunpack.c.l.b16 %v1084
        %v1153 = vunpack.c.l.b16 %v1085
        %v1154 = vunpack.c.l.b16 %v1086
        %v1155 = vunpack.c.l.b16 %v1087
        %v1156 = vunpack.c.l.b16 %v1088
        %v1157 = vunpack.c.l.b16 %v1089
        %v1158 = vunpack.c.l.b16 %v1090
        %v1159 = vunpack.c.l.b16 %v1091
        %v1160 = vunpack.c.l.b16 %v1092
        %v1161 = vunpack.c.l.b16 %v1093
        %v1162 = vunpack.c.l.b16 %v1094
        %v1163 = vunpack.c.l.b16 %v1095
        %v1164 = vunpack.c.l.b16 %v1096
        %v1165 = vunpack.c.l.b16 %v1097
        %v1166 = vunpack.c.l.b16 %v1098
        %v1167 = vunpack.c.l.b16 %v1099
        %v1168 = vunpack.c.l.b16 %v1100
        %v1169 = vunpack.c.l.b16 %v1101
        %v1170 = vunpack.c.l.b16 %v1102
        %v1171 = vunpack.c.l.b16 %v1103
        %v1172 = vunpack.c.l.b16 %v1104
        %v1173 = vunpack.c.l.b16 %v1105
        %v1174 = vunpack.c.l.b16 %v1106
        %v1175 = vunpack.c.l.b16 %v1107
        %v1176 = vunpack.c.l.b16 %v1108
        %v1177 = vunpack.c.l.b16 %v1109
        %v1178 = vunpack.c.l.b16 %v1110
        %v1179 = vunpack.c.l.b16 %v1111
        %v1180 = vunpack.c.l.b16 %v1112
        %v1181 = vunpack.c.l.b16 %v1113
        %v1182 = vunpack.c.l.b16 %v1114
        %v1183 = vunpack.c.l.b16 %v1115
        %v1184 = vpack.c.b16 %v1153, %v1152
        %v1185 = vpack.c.b16 %v1155, %v1154
        %v1186 = vpack.c.b16 %v1157, %v1156
        %v1187 = vpack.c.b16 %v1159, %v1158
        %v1188 = vpack.c.b16 %v1161, %v1160
        %v1189 = vpack.c.b16 %v1163, %v1162
        %v1190 = vpack.c.b16 %v1165, %v1164
        %v1191 = vpack.c.b16 %v1167, %v1166
        %v1192 = vpack.c.b16 %v1169, %v1168
        %v1193 = vpack.c.b16 %v1171, %v1170
        %v1194 = vpack.c.b16 %v1173, %v1172
        %v1195 = vpack.c.b16 %v1175, %v1174
        %v1196 = vpack.c.b16 %v1177, %v1176
        %v1197 = vpack.c.b16 %v1179, %v1178
        %v1198 = vpack.c.b16 %v1181, %v1180
        %v1199 = vpack.c.b16 %v1183, %v1182
        %1216 = vmatpush.bf16.msra.mxu0 %v1191
        %1217 = vmatpush.bf16.msra.mxu0 %v1190
        %1218 = vmatpush.bf16.msra.mxu0 %v1189
        %1219 = vmatpush.bf16.msra.mxu0 %v1188
        %1220 = vmatpush.bf16.msra.mxu0 %v1187
        %1221 = vmatpush.bf16.msra.mxu0 %v1186
        %1222 = vmatpush.bf16.msra.mxu0 %v1185
        %1223 = vmatpush.bf16.msra.mxu0 %v1184
        %1224 = vmatmul.bf16.gmra.mxu0 %v1082
        %v1225 = vpop.f32.mrf.mxu0
        %v1226 = vadd.f32 %v1118, %v1225
        %v1227 = vpop.f32.mrf.mxu0
        %v1228 = vadd.f32 %v1118, %v1227
        %1229 = vdwg.mxu0
        %1230 = vmatpush.bf16.msra.mxu0 %v1199
        %1231 = vmatpush.bf16.msra.mxu0 %v1198
        %1232 = vmatpush.bf16.msra.mxu0 %v1197
        %1233 = vmatpush.bf16.msra.mxu0 %v1196
        %1234 = vmatpush.bf16.msra.mxu0 %v1195
        %1235 = vmatpush.bf16.msra.mxu0 %v1194
        %1236 = vmatpush.bf16.msra.mxu0 %v1193
        %1237 = vmatpush.bf16.msra.mxu0 %v1192
        %1238 = vmatmul.bf16.gmra.mxu0 %v1083
        %v1239 = vpop.f32.mrf.mxu0
        %v1240 = vadd.f32 %v1226, %v1239
        %v1241 = vpop.f32.mrf.mxu0
        %v1242 = vadd.f32 %v1228, %v1241
        %1243 = vdwg.mxu0
        %v1244 = vmax.f32 %v1240, 0.0
        %v1245 = vmax.f32 %v1242, 0.0
        %v1246 = vpack.c.bf16 %v1245, %v1244
        %v1247 = vld [vmem:[#allocation7] sm:$0xf]
        %v1248 = vld [vmem:[#allocation7 + $0x4] sm:$0xf]
        %v1249 = vld [vmem:[#allocation7 + $0x8] sm:$0xf]
        %v1250 = vld [vmem:[#allocation7 + $0xc] sm:$0xf]
        %v1251 = vld [vmem:[#allocation7 + $0x10] sm:$0xf]
        %v1252 = vld [vmem:[#allocation7 + $0x14] sm:$0xf]
        %v1253 = vld [vmem:[#allocation7 + $0x18] sm:$0xf]
        %v1254 = vld [vmem:[#allocation7 + $0x1c] sm:$0xf]
        %v1255 = vld [vmem:[#allocation7 + $0x20] sm:$0xf]
        %v1256 = vld [vmem:[#allocation7 + $0x24] sm:$0xf]
        %v1257 = vld [vmem:[#allocation7 + $0x28] sm:$0xf]
        %v1258 = vld [vmem:[#allocation7 + $0x2c] sm:$0xf]
        %v1259 = vld [vmem:[#allocation7 + $0x30] sm:$0xf]
        %v1260 = vld [vmem:[#allocation7 + $0x34] sm:$0xf]
        %v1261 = vld [vmem:[#allocation7 + $0x38] sm:$0xf]
        %v1262 = vld [vmem:[#allocation7 + $0x3c] sm:$0xf]
        %v1263 = vld [vmem:[%s8] sm:$0x1]
        %v1265 = vperm.slane %v1263, 0
        %v1283 = vunpack.c.l.b16 %v1247
        %v1284 = vunpack.c.l.b16 %v1248
        %v1285 = vunpack.c.l.b16 %v1249
        %v1286 = vunpack.c.l.b16 %v1250
        %v1287 = vunpack.c.l.b16 %v1251
        %v1288 = vunpack.c.l.b16 %v1252
        %v1289 = vunpack.c.l.b16 %v1253
        %v1290 = vunpack.c.l.b16 %v1254
        %v1291 = vunpack.c.l.b16 %v1255
        %v1292 = vunpack.c.l.b16 %v1256
        %v1293 = vunpack.c.l.b16 %v1257
        %v1294 = vunpack.c.l.b16 %v1258
        %v1295 = vunpack.c.l.b16 %v1259
        %v1296 = vunpack.c.l.b16 %v1260
        %v1297 = vunpack.c.l.b16 %v1261
        %v1298 = vunpack.c.l.b16 %v1262
        %v1299 = vpack.c.b16 %v1284, %v1283
        %v1300 = vpack.c.b16 %v1286, %v1285
        %v1301 = vpack.c.b16 %v1288, %v1287
        %v1302 = vpack.c.b16 %v1290, %v1289
        %v1303 = vpack.c.b16 %v1292, %v1291
        %v1304 = vpack.c.b16 %v1294, %v1293
        %v1305 = vpack.c.b16 %v1296, %v1295
        %v1306 = vpack.c.b16 %v1298, %v1297
        %1315 = vmatpush.bf16.msra.mxu0 %v1306
        %1316 = vmatpush.bf16.msra.mxu0 %v1305
        %1317 = vmatpush.bf16.msra.mxu0 %v1304
        %1318 = vmatpush.bf16.msra.mxu0 %v1303
        %1319 = vmatpush.bf16.msra.mxu0 %v1302
        %1320 = vmatpush.bf16.msra.mxu0 %v1301
        %1321 = vmatpush.bf16.msra.mxu0 %v1300
        %1322 = vmatpush.bf16.msra.mxu0 %v1299
        %1323 = vmatmul.bf16.gmra.mxu0 %v1246
        %v1324 = vpop.f32.mrf.mxu0
        %v1325 = vadd.f32 %v1265, %v1324
        %v1326 = vpop.f32.mrf.mxu0
        %v1327 = vadd.f32 %v1265, %v1326
        %1328 = vdwg.mxu0
        %v1329 = vmax.f32 %v1325, 0.0
        %v1330 = vmax.f32 %v1327, 0.0
        %v1331 = vpack.c.bf16 %v1330, %v1329
        %v1332 = vld [vmem:[#allocation9] sm:$0xf]
        %v1333 = vld [vmem:[#allocation9 + $0x4] sm:$0xf]
        %v1334 = vld [vmem:[#allocation9 + $0x8] sm:$0xf]
        %v1335 = vld [vmem:[#allocation9 + $0xc] sm:$0xf]
        %v1336 = vld [vmem:[#allocation9 + $0x10] sm:$0xf]
        %v1337 = vld [vmem:[#allocation9 + $0x14] sm:$0xf]
        %v1338 = vld [vmem:[#allocation9 + $0x18] sm:$0xf]
        %v1339 = vld [vmem:[#allocation9 + $0x1c] sm:$0xf]
        %v1340 = vld [vmem:[#allocation9 + $0x20] sm:$0xf]
        %v1341 = vld [vmem:[#allocation9 + $0x24] sm:$0xf]
        %v1342 = vld [vmem:[#allocation9 + $0x28] sm:$0xf]
        %v1343 = vld [vmem:[#allocation9 + $0x2c] sm:$0xf]
        %v1344 = vld [vmem:[#allocation9 + $0x30] sm:$0xf]
        %v1345 = vld [vmem:[#allocation9 + $0x34] sm:$0xf]
        %v1346 = vld [vmem:[#allocation9 + $0x38] sm:$0xf]
        %v1347 = vld [vmem:[#allocation9 + $0x3c] sm:$0xf]
        %v1348 = vld [vmem:[%s10] sm:$0x1]
        %v1350 = vperm.slane %v1348, 0
        %v1368 = vunpack.c.l.b16 %v1332
        %v1369 = vunpack.c.l.b16 %v1333
        %v1370 = vunpack.c.l.b16 %v1334
        %v1371 = vunpack.c.l.b16 %v1335
        %v1372 = vunpack.c.l.b16 %v1336
        %v1373 = vunpack.c.l.b16 %v1337
        %v1374 = vunpack.c.l.b16 %v1338
        %v1375 = vunpack.c.l.b16 %v1339
        %v1376 = vunpack.c.l.b16 %v1340
        %v1377 = vunpack.c.l.b16 %v1341
        %v1378 = vunpack.c.l.b16 %v1342
        %v1379 = vunpack.c.l.b16 %v1343
        %v1380 = vunpack.c.l.b16 %v1344
        %v1381 = vunpack.c.l.b16 %v1345
        %v1382 = vunpack.c.l.b16 %v1346
        %v1383 = vunpack.c.l.b16 %v1347
        %v1384 = vpack.c.b16 %v1369, %v1368
        %v1385 = vpack.c.b16 %v1371, %v1370
        %v1386 = vpack.c.b16 %v1373, %v1372
        %v1387 = vpack.c.b16 %v1375, %v1374
        %v1388 = vpack.c.b16 %v1377, %v1376
        %v1389 = vpack.c.b16 %v1379, %v1378
        %v1390 = vpack.c.b16 %v1381, %v1380
        %v1391 = vpack.c.b16 %v1383, %v1382
        %1400 = vmatpush.bf16.msra.mxu0 %v1391
        %1401 = vmatpush.bf16.msra.mxu0 %v1390
        %1402 = vmatpush.bf16.msra.mxu0 %v1389
        %1403 = vmatpush.bf16.msra.mxu0 %v1388
        %1404 = vmatpush.bf16.msra.mxu0 %v1387
        %1405 = vmatpush.bf16.msra.mxu0 %v1386
        %1406 = vmatpush.bf16.msra.mxu0 %v1385
        %1407 = vmatpush.bf16.msra.mxu0 %v1384
        %1408 = vmatmul.bf16.gmra.mxu0 %v1331
        %v1409 = vpop.f32.mrf.mxu0
        %v1410 = vadd.f32 %v1350, %v1409
        %v1411 = vpop.f32.mrf.mxu0
        %v1412 = vadd.f32 %v1350, %v1411
        %1413 = vdwg.mxu0
        %v1414 = vmax.f32 %v1410, 0.0
        %v1415 = vmax.f32 %v1412, 0.0
        %v1416 = vpack.c.bf16 %v1414, %v1414
        %v1417 = vpack.c.bf16 %v1415, %v1415
        %1418 = vst [vmem:[%s471] sm:$0xf] %v1416
        %1419 = vst [vmem:[%s471 + $0x4] sm:$0xf] %v1417
        %s1420 = smul.u32 2, %s25
        %p1421 = scmp.lt.s32.totalorder %s1420, 3
        %s1422 = scalar_select %p1421, %s1420, 3
        %s1423 = smul.addr %s1422, 4
        %s1424 = scalar_lea.vmem %s11, %s1423
        // Predicated region
        $region85: #{critic_forward.1} parent=63 // pred_check
          %p1425 = pneg %p279
        $region86: #{critic_forward.1} parent=63 // pred_check_branch
          %1427 = sbr.rel (%p1425) target = $region88
        $region87: #{critic_forward.1} parent=63 // pred_region
          %s1428 = smul.u32 2, %s25
        $region88: #{critic_forward.1} parent=63 // pred_fallthru
          _
      $region64: #{critic_forward.1} parent=5 // pred_fallthru
        _
      %p1429 = scmp.le.s32.totalorder 2, %s20
      // Predicated region
      $region89: #{critic_forward.1} parent=5 // pred_check
        %p1430 = pneg %p1429
      $region90: #{critic_forward.1} parent=5 // pred_check_branch
        %1432 = sbr.rel (%p1430) target = $region92
      $region91: #{critic_forward.1} parent=5 // pred_region
        %s1433 = ssub.s32 %s20, 2
        // Predicated region
        $region93: #{critic_forward.1} parent=91 // pred_check
          %p1434 = pneg %p285
        $region94: #{critic_forward.1} parent=91 // pred_check_branch
          %1436 = sbr.rel (%p1434) target = $region96
        $region95: #{critic_forward.1} parent=91 // pred_region
          %s1437 = smul.u32 2, %s26
          %p1438 = scmp.lt.s32.totalorder %s1437, 3
          %s1439 = scalar_select %p1438, %s1437, 3
          %s1440 = smul.addr %s1439, 4
          %s1441 = scalar_lea.vmem %s11, %s1440
        $region96: #{critic_forward.1} parent=91 // pred_fallthru
          _
      $region92: #{critic_forward.1} parent=5 // pred_fallthru
        _
    $region6: #{critic_forward.1} parent=1 // loop_footer
      %s24 = sadd.s32 1, %s20
    $region7: #{critic_forward.1} parent=1 // loop_footer_branch
      %19 = sbr.rel target = $region3
    $region8: #{critic_forward.1} parent=1 // loop_exit
      _
    %1442 = vsyncpa [#allocation3], 1
    %s1443 = scalar_lea.sflag [#allocation3], 1
    %1444 = vsyncpa %s1443, 1
    %1445 = vsyncpa [#allocation5], 1
    %1446 = vsyncpa [#allocation8], 1

</llo_original>
